<compile_context>
chip_gen: v7x
topology: tpu7x:2x2x1
jax: 0.10.0
libtpu: 0.0.40
codegen_flags: <defaults>
</compile_context>

<pallas_src>
import functools

import jax
import jax.numpy as jnp
from jax import lax
from jax.experimental import pallas as pl
from jax.experimental.pallas import tpu as pltpu


def _patch_embed_kernel(x_ref, w_ref, b_ref, o_ref):
    """One (tm, N) output tile: full-K MXU dot (weight VMEM-resident) + bias."""
    acc = jnp.dot(x_ref[...], w_ref[...], preferred_element_type=jnp.float32)
    o_ref[...] = (acc + b_ref[...]).astype(o_ref.dtype)


def _round_up(a, m):
    return (a + m - 1) // m * m


_TARGET_TM = 2048  # patch rows per grid step (review: 1024-2048)


def _pick_tiles(m, sub):
    """Return (tm, m_pad). Prefer a tile that divides M exactly (no padding of
    the activation, no post-kernel slice copy) and keeps >= 2 grid steps when
    M is large enough (so v7x's two TensorCores both get work)."""
    if m <= _TARGET_TM:
        half = m // 2
        if m % 2 == 0 and half % sub == 0 and half >= 128:
            return half, m            # two balanced steps, no padding
        return m, m                    # single full-dim block (any m allowed)
    t = (_TARGET_TM // sub) * sub
    while t >= 256:
        if m % t == 0:
            return t, m                # divides exactly: no padding at all
        t -= sub
    # Rare fallback: no aligned divisor in range -> pad M (costs a post-slice copy).
    return _TARGET_TM, _round_up(m, _TARGET_TM)


@functools.partial(jax.jit, static_argnames=("patch_size", "use_bf16", "out_dtype"))
def patch_embeddings(x, conv_weight, conv_bias, *, patch_size, use_bf16=True,
                     out_dtype=None):
    """Pallas implementation of PatchEmbeddings.forward.

    x:           (B, 3, H, W)   float32  (NCHW, like PyTorch)
    conv_weight: (hidden, 3, P, P)
    conv_bias:   (hidden,)
    returns:     (B, num_patches, hidden) in `out_dtype` (default: x.dtype).
    """
    B, C, H, W = x.shape
    P = patch_size
    hidden = conv_weight.shape[0]
    hp, wp = H // P, W // P
    num_patches = hp * wp
    if out_dtype is None:
        out_dtype = x.dtype

    compute_dtype = jnp.bfloat16 if use_bf16 else x.dtype

    # --- glue: cast FIRST (so any materialized patchify intermediate is bf16),
    # then patchify in (c, kh, kw) order to match the conv weight layout.
    # (B, C, hp, P, wp, P) -> (B, hp, wp, C, P, P) -> (B*num_patches, C*P*P)
    xc = x.astype(compute_dtype)
    patches = xc.reshape(B, C, hp, P, wp, P)
    patches = jnp.transpose(patches, (0, 2, 4, 1, 3, 5))
    patches = patches.reshape(B * num_patches, C * P * P)

    # Conv weight (hidden, C, P, P) -> (K, hidden); bias kept in f32.
    w = conv_weight.reshape(hidden, C * P * P).T.astype(compute_dtype)
    b = conv_bias.reshape(1, hidden).astype(jnp.float32)

    M, K = patches.shape
    N = hidden

    # Tile selection: K and N blocks cover the full dims (so no padding of the
    # big activation); only M may need padding in the rare fallback case.
    sub = 16 if use_bf16 else 8
    tm, M_pad = _pick_tiles(M, sub)
    if M_pad != M:
        patches = jnp.pad(patches, ((0, M_pad - M), (0, 0)))

    out = pl.pallas_call(
        _patch_embed_kernel,
        out_shape=jax.ShapeDtypeStruct((M_pad, N), out_dtype),
        grid_spec=pltpu.PrefetchScalarGridSpec(
            num_scalar_prefetch=0,
            grid=(M_pad // tm,),
            in_specs=[
                # streaming patch tiles
                pl.BlockSpec((tm, K), lambda i: (i, 0)),
                # weight: constant block index -> fetched once, VMEM-resident,
                # single-buffered (second pipeline buffer would be pure waste)
                pl.BlockSpec((K, N), lambda i: (0, 0),
                             pipeline_mode=pl.Buffered(1)),
                # bias: constant, VMEM-resident, single-buffered
                pl.BlockSpec((1, N), lambda i: (0, 0),
                             pipeline_mode=pl.Buffered(1)),
            ],
            out_specs=pl.BlockSpec((tm, N), lambda i: (i, 0)),
        ),
        compiler_params=pltpu.CompilerParams(
            dimension_semantics=("parallel",),
            vmem_limit_bytes=48 * 1024 * 1024,
        ),
    )(patches, w, b)

    if M_pad != M:
        out = out[:M]
    return out.reshape(B, num_patches, hidden)


def _reference(x, conv_weight, conv_bias, patch_size):
    """Pure-JAX reference: strided conv + flatten(2) + transpose(1,2)."""
    y = lax.conv_general_dilated(
        x, conv_weight,
        window_strides=(patch_size, patch_size),
        padding="VALID",
        dimension_numbers=("NCHW", "OIHW", "NCHW"),
    ) + conv_bias[None, :, None, None]
    B, hidden = y.shape[0], y.shape[1]
    return jnp.transpose(y.reshape(B, hidden, -1), (0, 2, 1))


if __name__ == "__main__":
    # Small shapes consistent with the module: 3 input channels (fixed by the
    # module), img_size=32, patch_size=16 -> num_patches=4, hidden_dim=128.
    batch, in_ch, img_size, patch_size, hidden_dim = 2, 3, 32, 16, 128

    key = jax.random.PRNGKey(0)
    kx, kw, kb = jax.random.split(key, 3)
    x = jax.random.normal(kx, (batch, in_ch, img_size, img_size), jnp.float32)
    conv_weight = jax.random.normal(
        kw, (hidden_dim, in_ch, patch_size, patch_size), jnp.float32
    ) * 0.02
    conv_bias = jax.random.normal(kb, (hidden_dim,), jnp.float32) * 0.02

    ref = _reference(x, conv_weight, conv_bias, patch_size)
    num_patches = (img_size // patch_size) ** 2

    # f32 path (exact): tight tolerance vs the conv reference.
    out_f32 = patch_embeddings(
        x, conv_weight, conv_bias, patch_size=patch_size, use_bf16=False
    )
    out_f32 = jax.block_until_ready(out_f32)
    assert out_f32.shape == (batch, num_patches, hidden_dim), out_f32.shape
    assert jnp.allclose(out_f32, ref, atol=1e-3, rtol=1e-3)

    # bf16-operand path (default, perf): f32 accumulate, looser tolerance.
    out_bf16 = patch_embeddings(
        x, conv_weight, conv_bias, patch_size=patch_size, use_bf16=True
    )
    out_bf16 = jax.block_until_ready(out_bf16)
    assert out_bf16.shape == (batch, num_patches, hidden_dim), out_bf16.shape
    assert jnp.allclose(out_bf16, ref, atol=3e-2, rtol=3e-2)

    # bf16-output path (halves the dominant output HBM stream for downstream
    # consumers that accept bf16).
    out_bf16_out = patch_embeddings(
        x, conv_weight, conv_bias, patch_size=patch_size, use_bf16=True,
        out_dtype=jnp.bfloat16,
    )
    out_bf16_out = jax.block_until_ready(out_bf16_out)
    assert out_bf16_out.dtype == jnp.bfloat16
    assert out_bf16_out.shape == (batch, num_patches, hidden_dim)
    assert jnp.allclose(out_bf16_out.astype(jnp.float32), ref, atol=5e-2, rtol=5e-2)

    print("KERNEL_OK")
</pallas_src>

<mosaic_0001>
module attributes {stable_mosaic.version = 11 : i64} {
  func.func @_patch_embed_kernel(%arg0: i32, %arg1: memref<8x768xf32, #tpu.memory_space<vmem>>, %arg2: memref<768x128xf32, #tpu.memory_space<vmem>>, %arg3: memref<1x128xf32, #tpu.memory_space<vmem>>, %arg4: memref<8x128xf32, #tpu.memory_space<vmem>>) attributes {dimension_semantics = [#tpu.dimension_semantics<parallel>], iteration_bounds = array<i64: 1>, scalar_prefetch = 0 : i64, scratch_operands = 0 : i64, tpu.core_type = #tpu.core_type<tc>, window_params = [{transform_indices = @transform_0, window_bounds = array<i64: 8, 768>}, {pipeline_mode = #tpu.pipeline_mode<synchronous>, transform_indices = @transform_1, window_bounds = array<i64: 768, 128>}, {pipeline_mode = #tpu.pipeline_mode<synchronous>, transform_indices = @transform_2, window_bounds = array<i64: 1, 128>}, {transform_indices = @transform_3, window_bounds = array<i64: 8, 128>}]} {
    %c0 = arith.constant 0 : index
    %c0_0 = arith.constant 0 : index
    %0 = vector.load %arg1[%c0, %c0_0] : memref<8x768xf32, #tpu.memory_space<vmem>>, vector<8x768xf32>
    %c0_1 = arith.constant 0 : index
    %c0_2 = arith.constant 0 : index
    %1 = vector.load %arg2[%c0_1, %c0_2] : memref<768x128xf32, #tpu.memory_space<vmem>>, vector<768x128xf32>
    %cst = arith.constant dense<0.000000e+00> : vector<8x128xf32>
    %2 = tpu.matmul %0, %1, %cst {dimension_numbers = #tpu.dot_dimension_numbers<[1], [0], [0], [1], [0, 0, 1, 1], [], []>} : vector<8x768xf32>, vector<768x128xf32>, vector<8x128xf32> -> vector<8x128xf32>
    %c0_3 = arith.constant 0 : index
    %c0_4 = arith.constant 0 : index
    %3 = vector.load %arg3[%c0_3, %c0_4] : memref<1x128xf32, #tpu.memory_space<vmem>>, vector<1x128xf32>
    %4 = vector.broadcast %3 : vector<1x128xf32> to vector<8x128xf32>
    %5 = arith.addf %2, %4 : vector<8x128xf32>
    %c0_5 = arith.constant 0 : index
    %c0_6 = arith.constant 0 : index
    %6 = vector.load %arg4[%c0_5, %c0_6] : memref<8x128xf32, #tpu.memory_space<vmem>>, vector<8x128xf32>
    tpu.vector_store %arg4[%c0_5, %c0_6], %5 {strides = array<i32>} : memref<8x128xf32, #tpu.memory_space<vmem>>, vector<8x128xf32>,
    return
  }
  func.func @transform_0(%arg0: i32) -> (i32, i32) {
    %c0_i32 = arith.constant 0 : i32
    %c0_i32_0 = arith.constant 0 : i32
    return %arg0, %c0_i32 : i32, i32
  }
  func.func @transform_1(%arg0: i32) -> (i32, i32) {
    %c0_i32 = arith.constant 0 : i32
    %c0_i32_0 = arith.constant 0 : i32
    %c0_i32_1 = arith.constant 0 : i32
    return %c0_i32, %c0_i32_0 : i32, i32
  }
  func.func @transform_2(%arg0: i32) -> (i32, i32) {
    %c0_i32 = arith.constant 0 : i32
    %c0_i32_0 = arith.constant 0 : i32
    %c0_i32_1 = arith.constant 0 : i32
    return %c0_i32, %c0_i32_0 : i32, i32
  }
  func.func @transform_3(%arg0: i32) -> (i32, i32) {
    %c0_i32 = arith.constant 0 : i32
    %c0_i32_0 = arith.constant 0 : i32
    return %arg0, %c0_i32 : i32, i32
  }
}

</mosaic_0001>

<llo_original>
// kernel: patch_embeddings.1
$region0: #{patch_embeddings.1}
  #allocation0 [shape = 'u32[]', space=smem, size = 0x4, offset = 0x4, fixed_abs, tag = 'smem constant byte address 0x4 - core index']
  #allocation1 [shape = 'u32[144,128]{1,0:T(1,128)}', space=vmem, size = 0x12000, scoped, tag = 'internal scratch']
  %s0 = inlined_call_operand.vmem [shape: f32[8,768], index: 0, kind: input, shape index: {}]
  %s1 = inlined_call_operand.vmem [shape: f32[768,128], index: 1, kind: input, shape index: {}]
  %s2 = inlined_call_operand.vmem [shape: f32[1,128], index: 2, kind: input, shape index: {}]
  %s3 = inlined_call_operand.hbm [shape: f32[8,128], index: 3, kind: output, shape index: {}]
  %s4 = sld [smem:[#allocation0]]
  $region22: #{patch_embeddings.1} parent=0
    _
  %s6 = ssub.s32 1, %s4
  %s7 = scalar_select 0, %s6, %s4
  $region1: #{patch_embeddings.1} parent=0
    #allocation2 [shape = 'u8[4096]{0}', space=vmem, size = 0x1000, scoped, tag = 'output window, operand 0, single buffered']
    #allocation3 [shape = 's32[1]{0}', space=sflag, size = 0x4, scoped, tag = 'scoped memory for patch_embeddings.1']
    %8 = vsyncpa [#allocation3], 0
    // Predicated region
    $region2: #{patch_embeddings.1} parent=1 // pred_check
      _
    $region3: #{patch_embeddings.1} parent=1 // pred_check_branch
      %10 = sbr.rel (0) target = $region5
    $region4: #{patch_embeddings.1} parent=1 // pred_region
      _
    $region5: #{patch_embeddings.1} parent=1 // pred_fallthru
      _
    // Predicated region
    $region6: #{patch_embeddings.1} parent=1 // pred_check
      _
    $region7: #{patch_embeddings.1} parent=1 // pred_check_branch
      %12 = sbr.rel (0) target = $region9
    $region8: #{patch_embeddings.1} parent=1 // pred_region
      _
    $region9: #{patch_embeddings.1} parent=1 // pred_fallthru
      _
    // Predicated region
    $region10: #{patch_embeddings.1} parent=1 // pred_check
      _
    $region11: #{patch_embeddings.1} parent=1 // pred_check_branch
      %14 = sbr.rel (0) target = $region13
    $region12: #{patch_embeddings.1} parent=1 // pred_region
      _
    $region13: #{patch_embeddings.1} parent=1 // pred_fallthru
      _
    %v15 = vld [vmem:[%s0] sm:$0xff]
    %v16 = vld [vmem:[%s0 + $0x8] sm:$0xff]
    %v17 = vld [vmem:[%s0 + $0x10] sm:$0xff]
    %v18 = vld [vmem:[%s0 + $0x18] sm:$0xff]
    %v19 = vld [vmem:[%s0 + $0x20] sm:$0xff]
    %v20 = vld [vmem:[%s0 + $0x28] sm:$0xff]
    %v21 = vld [vmem:[%s1] sm:$0xff]
    %v22 = vld [vmem:[%s1 + $0x8] sm:$0xff]
    %v23 = vld [vmem:[%s1 + $0x10] sm:$0xff]
    %v24 = vld [vmem:[%s1 + $0x18] sm:$0xff]
    %v25 = vld [vmem:[%s1 + $0x20] sm:$0xff]
    %v26 = vld [vmem:[%s1 + $0x28] sm:$0xff]
    %v27 = vld [vmem:[%s1 + $0x30] sm:$0xff]
    %v28 = vld [vmem:[%s1 + $0x38] sm:$0xff]
    %v29 = vld [vmem:[%s1 + $0x40] sm:$0xff]
    %v30 = vld [vmem:[%s1 + $0x48] sm:$0xff]
    %v31 = vld [vmem:[%s1 + $0x50] sm:$0xff]
    %v32 = vld [vmem:[%s1 + $0x58] sm:$0xff]
    %v33 = vld [vmem:[%s1 + $0x60] sm:$0xff]
    %v34 = vld [vmem:[%s1 + $0x68] sm:$0xff]
    %v35 = vld [vmem:[%s1 + $0x70] sm:$0xff]
    %v36 = vld [vmem:[%s1 + $0x78] sm:$0xff]
    %v37 = vld [vmem:[%s1 + $0x80] sm:$0xff]
    %v38 = vld [vmem:[%s1 + $0x88] sm:$0xff]
    %v39 = vld [vmem:[%s1 + $0x90] sm:$0xff]
    %v40 = vld [vmem:[%s1 + $0x98] sm:$0xff]
    %v41 = vld [vmem:[%s1 + $0xa0] sm:$0xff]
    %v42 = vld [vmem:[%s1 + $0xa8] sm:$0xff]
    %v43 = vld [vmem:[%s1 + $0xb0] sm:$0xff]
    %v44 = vld [vmem:[%s1 + $0xb8] sm:$0xff]
    %v45 = vld [vmem:[%s1 + $0xc0] sm:$0xff]
    %v46 = vld [vmem:[%s1 + $0xc8] sm:$0xff]
    %v47 = vld [vmem:[%s1 + $0xd0] sm:$0xff]
    %v48 = vld [vmem:[%s1 + $0xd8] sm:$0xff]
    %v49 = vld [vmem:[%s1 + $0xe0] sm:$0xff]
    %v50 = vld [vmem:[%s1 + $0xe8] sm:$0xff]
    %v51 = vld [vmem:[%s1 + $0xf0] sm:$0xff]
    %v52 = vld [vmem:[%s1 + $0xf8] sm:$0xff]
    %v53 = vld [vmem:[%s1 + $0x100] sm:$0xff]
    %v54 = vld [vmem:[%s1 + $0x108] sm:$0xff]
    %v55 = vld [vmem:[%s1 + $0x110] sm:$0xff]
    %v56 = vld [vmem:[%s1 + $0x118] sm:$0xff]
    %v57 = vld [vmem:[%s1 + $0x120] sm:$0xff]
    %v58 = vld [vmem:[%s1 + $0x128] sm:$0xff]
    %v59 = vld [vmem:[%s1 + $0x130] sm:$0xff]
    %v60 = vld [vmem:[%s1 + $0x138] sm:$0xff]
    %v61 = vld [vmem:[%s1 + $0x140] sm:$0xff]
    %v62 = vld [vmem:[%s1 + $0x148] sm:$0xff]
    %v63 = vld [vmem:[%s1 + $0x150] sm:$0xff]
    %v64 = vld [vmem:[%s1 + $0x158] sm:$0xff]
    %v65 = vld [vmem:[%s1 + $0x160] sm:$0xff]
    %v66 = vld [vmem:[%s1 + $0x168] sm:$0xff]
    %v67 = vld [vmem:[%s1 + $0x170] sm:$0xff]
    %v68 = vld [vmem:[%s1 + $0x178] sm:$0xff]
    %v69 = vld [vmem:[%s1 + $0x180] sm:$0xff]
    %v70 = vld [vmem:[%s1 + $0x188] sm:$0xff]
    %v71 = vld [vmem:[%s1 + $0x190] sm:$0xff]
    %v72 = vld [vmem:[%s1 + $0x198] sm:$0xff]
    %v73 = vld [vmem:[%s1 + $0x1a0] sm:$0xff]
    %v74 = vld [vmem:[%s1 + $0x1a8] sm:$0xff]
    %v75 = vld [vmem:[%s1 + $0x1b0] sm:$0xff]
    %v76 = vld [vmem:[%s1 + $0x1b8] sm:$0xff]
    %v77 = vld [vmem:[%s1 + $0x1c0] sm:$0xff]
    %v78 = vld [vmem:[%s1 + $0x1c8] sm:$0xff]
    %v79 = vld [vmem:[%s1 + $0x1d0] sm:$0xff]
    %v80 = vld [vmem:[%s1 + $0x1d8] sm:$0xff]
    %v81 = vld [vmem:[%s1 + $0x1e0] sm:$0xff]
    %v82 = vld [vmem:[%s1 + $0x1e8] sm:$0xff]
    %v83 = vld [vmem:[%s1 + $0x1f0] sm:$0xff]
    %v84 = vld [vmem:[%s1 + $0x1f8] sm:$0xff]
    %v85 = vld [vmem:[%s1 + $0x200] sm:$0xff]
    %v86 = vld [vmem:[%s1 + $0x208] sm:$0xff]
    %v87 = vld [vmem:[%s1 + $0x210] sm:$0xff]
    %v88 = vld [vmem:[%s1 + $0x218] sm:$0xff]
    %v89 = vld [vmem:[%s1 + $0x220] sm:$0xff]
    %v90 = vld [vmem:[%s1 + $0x228] sm:$0xff]
    %v91 = vld [vmem:[%s1 + $0x230] sm:$0xff]
    %v92 = vld [vmem:[%s1 + $0x238] sm:$0xff]
    %v93 = vld [vmem:[%s1 + $0x240] sm:$0xff]
    %v94 = vld [vmem:[%s1 + $0x248] sm:$0xff]
    %v95 = vld [vmem:[%s1 + $0x250] sm:$0xff]
    %v96 = vld [vmem:[%s1 + $0x258] sm:$0xff]
    %v97 = vld [vmem:[%s1 + $0x260] sm:$0xff]
    %v98 = vld [vmem:[%s1 + $0x268] sm:$0xff]
    %v99 = vld [vmem:[%s1 + $0x270] sm:$0xff]
    %v100 = vld [vmem:[%s1 + $0x278] sm:$0xff]
    %v101 = vld [vmem:[%s1 + $0x280] sm:$0xff]
    %v102 = vld [vmem:[%s1 + $0x288] sm:$0xff]
    %v103 = vld [vmem:[%s1 + $0x290] sm:$0xff]
    %v104 = vld [vmem:[%s1 + $0x298] sm:$0xff]
    %v105 = vld [vmem:[%s1 + $0x2a0] sm:$0xff]
    %v106 = vld [vmem:[%s1 + $0x2a8] sm:$0xff]
    %v107 = vld [vmem:[%s1 + $0x2b0] sm:$0xff]
    %v108 = vld [vmem:[%s1 + $0x2b8] sm:$0xff]
    %v109 = vld [vmem:[%s1 + $0x2c0] sm:$0xff]
    %v110 = vld [vmem:[%s1 + $0x2c8] sm:$0xff]
    %v111 = vld [vmem:[%s1 + $0x2d0] sm:$0xff]
    %v112 = vld [vmem:[%s1 + $0x2d8] sm:$0xff]
    %v113 = vld [vmem:[%s1 + $0x2e0] sm:$0xff]
    %v114 = vld [vmem:[%s1 + $0x2e8] sm:$0xff]
    %v115 = vld [vmem:[%s1 + $0x2f0] sm:$0xff]
    %v116 = vld [vmem:[%s1 + $0x2f8] sm:$0xff]
    %v117 = vld [vmem:[%s2] sm:$0x1]
    %v119 = vlaneseq
    %v120 = vshrl.u32 %v119, 7
    %v121 = vsub.s32 0, %v120
    %v122 = vrot.slane %v117, %v121
    %124 = vmatprep.subr.mxu0 0.0
    %125 = vmatpush1.msra.mxu0 %v21
    %126 = vmatprep.subr.mxu0 0.0
    %127 = vmatpush1.msra.mxu0 %v22
    %128 = vmatprep.subr.mxu0 0.0
    %129 = vmatpush1.msra.mxu0 %v23
    %130 = vmatprep.subr.mxu0 0.0
    %131 = vmatpush1.msra.mxu0 %v24
    %132 = vmatprep.subr.mxu0 0.0
    %133 = vmatpush1.msra.mxu0 %v25
    %134 = vmatprep.subr.mxu0 0.0
    %135 = vmatpush1.msra.mxu0 %v26
    %136 = vmatprep.subr.mxu0 0.0
    %137 = vmatpush1.msra.mxu0 %v27
    %138 = vmatprep.subr.mxu0 0.0
    %139 = vmatpush1.msra.mxu0 %v28
    %140 = vmatprep.subr.mxu0 0.0
    %141 = vmatpush1.msra.mxu0 %v29
    %142 = vmatprep.subr.mxu0 0.0
    %143 = vmatpush1.msra.mxu0 %v30
    %144 = vmatprep.subr.mxu0 0.0
    %145 = vmatpush1.msra.mxu0 %v31
    %146 = vmatprep.subr.mxu0 0.0
    %147 = vmatpush1.msra.mxu0 %v32
    %148 = vmatprep.subr.mxu0 0.0
    %149 = vmatpush1.msra.mxu0 %v33
    %150 = vmatprep.subr.mxu0 0.0
    %151 = vmatpush1.msra.mxu0 %v34
    %152 = vmatprep.subr.mxu0 0.0
    %153 = vmatpush1.msra.mxu0 %v35
    %154 = vmatprep.subr.mxu0 0.0
    %155 = vmatpush1.msra.mxu0 %v36
    %156 = vmatprep.subr.mxu0 0.0
    %157 = vmatpush1.msra.mxu0 %v37
    %158 = vmatprep.subr.mxu0 0.0
    %159 = vmatpush1.msra.mxu0 %v38
    %160 = vmatprep.subr.mxu0 0.0
    %161 = vmatpush1.msra.mxu0 %v39
    %162 = vmatprep.subr.mxu0 0.0
    %163 = vmatpush1.msra.mxu0 %v40
    %164 = vmatprep.subr.mxu0 0.0
    %165 = vmatpush1.msra.mxu0 %v41
    %166 = vmatprep.subr.mxu0 0.0
    %167 = vmatpush1.msra.mxu0 %v42
    %168 = vmatprep.subr.mxu0 0.0
    %169 = vmatpush1.msra.mxu0 %v43
    %170 = vmatprep.subr.mxu0 0.0
    %171 = vmatpush1.msra.mxu0 %v44
    %172 = vmatprep.subr.mxu0 0.0
    %173 = vmatpush1.msra.mxu0 %v45
    %174 = vmatprep.subr.mxu0 0.0
    %175 = vmatpush1.msra.mxu0 %v46
    %176 = vmatprep.subr.mxu0 0.0
    %177 = vmatpush1.msra.mxu0 %v47
    %178 = vmatprep.subr.mxu0 0.0
    %179 = vmatpush1.msra.mxu0 %v48
    %180 = vmatprep.subr.mxu0 0.0
    %181 = vmatpush1.msra.mxu0 %v49
    %182 = vmatprep.subr.mxu0 0.0
    %183 = vmatpush1.msra.mxu0 %v50
    %184 = vmatprep.subr.mxu0 0.0
    %185 = vmatpush1.msra.mxu0 %v51
    %186 = vmatprep.subr.mxu0 0.0
    %187 = vmatpush1.msra.mxu0 %v52
    %188 = vmatprep.mubr.f32.mxu0 %v16
    %189 = vmatmul.mubr.f32.gmra.mrb[0].mxu0 %v15
    %v190 = vpop.f32.mrb[0].mxu0
    %v191 = vadd.f32 %v122, %v190
    %v192 = vpop.f32.mrb[0].mxu0
    %193 = vdwg.mxu0
    %194 = vmatprep.subr.mxu0 0.0
    %195 = vmatpush1.msra.mxu0 %v53
    %196 = vmatprep.subr.mxu0 0.0
    %197 = vmatpush1.msra.mxu0 %v54
    %198 = vmatprep.subr.mxu0 0.0
    %199 = vmatpush1.msra.mxu0 %v55
    %200 = vmatprep.subr.mxu0 0.0
    %201 = vmatpush1.msra.mxu0 %v56
    %202 = vmatprep.subr.mxu0 0.0
    %203 = vmatpush1.msra.mxu0 %v57
    %204 = vmatprep.subr.mxu0 0.0
    %205 = vmatpush1.msra.mxu0 %v58
    %206 = vmatprep.subr.mxu0 0.0
    %207 = vmatpush1.msra.mxu0 %v59
    %208 = vmatprep.subr.mxu0 0.0
    %209 = vmatpush1.msra.mxu0 %v60
    %210 = vmatprep.subr.mxu0 0.0
    %211 = vmatpush1.msra.mxu0 %v61
    %212 = vmatprep.subr.mxu0 0.0
    %213 = vmatpush1.msra.mxu0 %v62
    %214 = vmatprep.subr.mxu0 0.0
    %215 = vmatpush1.msra.mxu0 %v63
    %216 = vmatprep.subr.mxu0 0.0
    %217 = vmatpush1.msra.mxu0 %v64
    %218 = vmatprep.subr.mxu0 0.0
    %219 = vmatpush1.msra.mxu0 %v65
    %220 = vmatprep.subr.mxu0 0.0
    %221 = vmatpush1.msra.mxu0 %v66
    %222 = vmatprep.subr.mxu0 0.0
    %223 = vmatpush1.msra.mxu0 %v67
    %224 = vmatprep.subr.mxu0 0.0
    %225 = vmatpush1.msra.mxu0 %v68
    %226 = vmatprep.subr.mxu0 0.0
    %227 = vmatpush1.msra.mxu0 %v69
    %228 = vmatprep.subr.mxu0 0.0
    %229 = vmatpush1.msra.mxu0 %v70
    %230 = vmatprep.subr.mxu0 0.0
    %231 = vmatpush1.msra.mxu0 %v71
    %232 = vmatprep.subr.mxu0 0.0
    %233 = vmatpush1.msra.mxu0 %v72
    %234 = vmatprep.subr.mxu0 0.0
    %235 = vmatpush1.msra.mxu0 %v73
    %236 = vmatprep.subr.mxu0 0.0
    %237 = vmatpush1.msra.mxu0 %v74
    %238 = vmatprep.subr.mxu0 0.0
    %239 = vmatpush1.msra.mxu0 %v75
    %240 = vmatprep.subr.mxu0 0.0
    %241 = vmatpush1.msra.mxu0 %v76
    %242 = vmatprep.subr.mxu0 0.0
    %243 = vmatpush1.msra.mxu0 %v77
    %244 = vmatprep.subr.mxu0 0.0
    %245 = vmatpush1.msra.mxu0 %v78
    %246 = vmatprep.subr.mxu0 0.0
    %247 = vmatpush1.msra.mxu0 %v79
    %248 = vmatprep.subr.mxu0 0.0
    %249 = vmatpush1.msra.mxu0 %v80
    %250 = vmatprep.subr.mxu0 0.0
    %251 = vmatpush1.msra.mxu0 %v81
    %252 = vmatprep.subr.mxu0 0.0
    %253 = vmatpush1.msra.mxu0 %v82
    %254 = vmatprep.subr.mxu0 0.0
    %255 = vmatpush1.msra.mxu0 %v83
    %256 = vmatprep.subr.mxu0 0.0
    %257 = vmatpush1.msra.mxu0 %v84
    %258 = vmatprep.mubr.f32.mxu0 %v18
    %259 = vmatmul.mubr.f32.gmra.mrb[0].mxu0 %v17
    %v260 = vpop.f32.mrb[0].mxu0
    %v261 = vadd.f32 %v191, %v260
    %v262 = vpop.f32.mrb[0].mxu0
    %263 = vdwg.mxu0
    %264 = vmatprep.subr.mxu0 0.0
    %265 = vmatpush1.msra.mxu0 %v85
    %266 = vmatprep.subr.mxu0 0.0
    %267 = vmatpush1.msra.mxu0 %v86
    %268 = vmatprep.subr.mxu0 0.0
    %269 = vmatpush1.msra.mxu0 %v87
    %270 = vmatprep.subr.mxu0 0.0
    %271 = vmatpush1.msra.mxu0 %v88
    %272 = vmatprep.subr.mxu0 0.0
    %273 = vmatpush1.msra.mxu0 %v89
    %274 = vmatprep.subr.mxu0 0.0
    %275 = vmatpush1.msra.mxu0 %v90
    %276 = vmatprep.subr.mxu0 0.0
    %277 = vmatpush1.msra.mxu0 %v91
    %278 = vmatprep.subr.mxu0 0.0
    %279 = vmatpush1.msra.mxu0 %v92
    %280 = vmatprep.subr.mxu0 0.0
    %281 = vmatpush1.msra.mxu0 %v93
    %282 = vmatprep.subr.mxu0 0.0
    %283 = vmatpush1.msra.mxu0 %v94
    %284 = vmatprep.subr.mxu0 0.0
    %285 = vmatpush1.msra.mxu0 %v95
    %286 = vmatprep.subr.mxu0 0.0
    %287 = vmatpush1.msra.mxu0 %v96
    %288 = vmatprep.subr.mxu0 0.0
    %289 = vmatpush1.msra.mxu0 %v97
    %290 = vmatprep.subr.mxu0 0.0
    %291 = vmatpush1.msra.mxu0 %v98
    %292 = vmatprep.subr.mxu0 0.0
    %293 = vmatpush1.msra.mxu0 %v99
    %294 = vmatprep.subr.mxu0 0.0
    %295 = vmatpush1.msra.mxu0 %v100
    %296 = vmatprep.subr.mxu0 0.0
    %297 = vmatpush1.msra.mxu0 %v101
    %298 = vmatprep.subr.mxu0 0.0
    %299 = vmatpush1.msra.mxu0 %v102
    %300 = vmatprep.subr.mxu0 0.0
    %301 = vmatpush1.msra.mxu0 %v103
    %302 = vmatprep.subr.mxu0 0.0
    %303 = vmatpush1.msra.mxu0 %v104
    %304 = vmatprep.subr.mxu0 0.0
    %305 = vmatpush1.msra.mxu0 %v105
    %306 = vmatprep.subr.mxu0 0.0
    %307 = vmatpush1.msra.mxu0 %v106
    %308 = vmatprep.subr.mxu0 0.0
    %309 = vmatpush1.msra.mxu0 %v107
    %310 = vmatprep.subr.mxu0 0.0
    %311 = vmatpush1.msra.mxu0 %v108
    %312 = vmatprep.subr.mxu0 0.0
    %313 = vmatpush1.msra.mxu0 %v109
    %314 = vmatprep.subr.mxu0 0.0
    %315 = vmatpush1.msra.mxu0 %v110
    %316 = vmatprep.subr.mxu0 0.0
    %317 = vmatpush1.msra.mxu0 %v111
    %318 = vmatprep.subr.mxu0 0.0
    %319 = vmatpush1.msra.mxu0 %v112
    %320 = vmatprep.subr.mxu0 0.0
    %321 = vmatpush1.msra.mxu0 %v113
    %322 = vmatprep.subr.mxu0 0.0
    %323 = vmatpush1.msra.mxu0 %v114
    %324 = vmatprep.subr.mxu0 0.0
    %325 = vmatpush1.msra.mxu0 %v115
    %326 = vmatprep.subr.mxu0 0.0
    %327 = vmatpush1.msra.mxu0 %v116
    %328 = vmatprep.mubr.f32.mxu0 %v20
    %329 = vmatmul.mubr.f32.gmra.mrb[0].mxu0 %v19
    %v330 = vpop.f32.mrb[0].mxu0
    %v331 = vadd.f32 %v261, %v330
    %v332 = vpop.f32.mrb[0].mxu0
    %333 = vdwg.mxu0
    %334 = vst [vmem:[#allocation2] sm:$0xff] %v331
    // Predicated region
    $region14: #{patch_embeddings.1} parent=1 // pred_check
      _
    $region15: #{patch_embeddings.1} parent=1 // pred_check_branch
      %336 = sbr.rel (0) target = $region17
    $region16: #{patch_embeddings.1} parent=1 // pred_region
      %s338 = ssub.s32 128, 128
      %339 = vsyncadd [#allocation3], %s338
      %s341 = sshll.u32 [#allocation2], 4
      %s342 = int_to_ptr.vmem [resolvable:$true] %s341
      %344 = dma.vmem_to_hbm [thread:$0]  %s342, 128, %s3, [#allocation3]
    $region17: #{patch_embeddings.1} parent=1 // pred_fallthru
      _
    // Predicated region
    $region18: #{patch_embeddings.1} parent=1 // pred_check
      _
    $region19: #{patch_embeddings.1} parent=1 // pred_check_branch
      %346 = sbr.rel (0) target = $region21
    $region20: #{patch_embeddings.1} parent=1 // pred_region
      %347 = dma.done [#allocation3], 128
    $region21: #{patch_embeddings.1} parent=1 // pred_fallthru
      _
    %348 = vsyncpa [#allocation3], 1

</llo_original>
